<compile_context>
chip_gen: v6e
topology: v6e:2x2x1
jax: 0.10.0
libtpu: 0.0.40
codegen_flags: <defaults>
</compile_context>

<pallas_src>
import math
from functools import partial

import jax
import jax.numpy as jnp
import numpy as np
from jax.experimental import pallas as pl
from jax.experimental.pallas import tpu as pltpu

LN_EPS = 1e-5                      # nn.LayerNorm default eps
_INV_SQRT2 = 1.0 / math.sqrt(2.0)

ROW_BLOCK_CAP = 1024               # rows per grid step (multiple of 256)


def _gelu_exact(x):
    # PyTorch default (exact, erf-based) GELU.
    return 0.5 * x * (1.0 + jax.lax.erf(x * _INV_SQRT2))


def _gelu_tanh(x):
    # tanh approximation (EUP-friendly); numerics differ slightly from exact.
    return jax.nn.gelu(x, approximate=True)


def _layernorm(x, gamma, beta):
    mu = jnp.mean(x, axis=-1, keepdims=True)
    xc = x - mu
    var = jnp.mean(xc * xc, axis=-1, keepdims=True)   # biased variance
    return xc * jax.lax.rsqrt(var + LN_EPS) * gamma + beta


def _make_kernel(approx_gelu):
    gelu = _gelu_tanh if approx_gelu else _gelu_exact

    def feedforward_kernel(x_ref, pack_ref, bias1_ref, w1_ref, w2_ref, o_ref):
        # x_ref: (RB, D)    pack_ref: (8, D) f32 = [ln1_g, ln1_b, b2, ln2_g, ln2_b, 0,0,0]
        # bias1_ref: (1, H) w1_ref: (D, H)  w2_ref: (H, D)  o_ref: (RB, D)
        x = x_ref[...].astype(jnp.float32)
        pack = pack_ref[...]
        g1, b1 = pack[0:1, :], pack[1:2, :]
        bias2 = pack[2:3, :]
        g2, b2 = pack[3:4, :], pack[4:5, :]

        # LayerNorm(dim)  (f32 statistics)
        h = _layernorm(x, g1, b1)

        # Linear(dim -> hidden): bf16 (or f32) operands on the MXU, f32 accumulate.
        a = jnp.dot(h.astype(w1_ref.dtype), w1_ref[...],
                    preferred_element_type=jnp.float32) + bias1_ref[...]
        a = gelu(a)

        # Linear(hidden -> dim)
        y = jnp.dot(a.astype(w2_ref.dtype), w2_ref[...],
                    preferred_element_type=jnp.float32) + bias2

        # LayerNorm(dim) -> GELU
        z = _layernorm(y, g2, b2)
        o_ref[...] = gelu(z).astype(o_ref.dtype)

    return feedforward_kernel


def _round_up(a, b):
    return ((a + b - 1) // b) * b


def feedforward(x, params, *, mxu_dtype=jnp.bfloat16, row_block=None,
                approx_gelu=False, x_buffers=None):
    """x: (..., dim); output has x.dtype (pass bf16 x for the bf16-activation path).

    params (PyTorch layout): w1 (hidden, dim), b1 (hidden,), w2 (dim, hidden),
    b2 (dim,), ln1_g/ln1_b/ln2_g/ln2_b (dim,)."""
    orig_shape = x.shape
    D = orig_shape[-1]
    H = params["w1"].shape[0]

    xf = x.reshape(-1, D)
    M = xf.shape[0]
    Mp8 = _round_up(max(M, 8), 8)          # sublane-aligned row count

    # Row blocking: one full block for small M, capped blocks (many grid steps,
    # pipelined DMA, full MXU rows, bounded VMEM) for large M.
    if row_block is None:
        row_block = Mp8 if Mp8 <= ROW_BLOCK_CAP else ROW_BLOCK_CAP
    if row_block <= 0 or row_block % 8 != 0:
        raise ValueError(f"row_block must be a positive multiple of 8, got {row_block}")

    M_pad = _round_up(Mp8, row_block)
    if M_pad != M:
        xf = jnp.pad(xf, ((0, M_pad - M), (0, 0)))   # padded rows are independent & sliced off

    # Weights transposed once in the wrapper; cast to the MXU operand dtype so
    # HBM traffic for the biggest operands is halved on the bf16 path.
    w1t = params["w1"].T.astype(mxu_dtype)                  # (D, H)
    w2t = params["w2"].T.astype(mxu_dtype)                  # (H, D)
    bias1 = params["b1"].reshape(1, H).astype(jnp.float32)

    # Pack the five per-feature (dim,) params into one (8, D) lane-dense array.
    pack = jnp.zeros((8, D), jnp.float32)
    pack = pack.at[0].set(params["ln1_g"].astype(jnp.float32))
    pack = pack.at[1].set(params["ln1_b"].astype(jnp.float32))
    pack = pack.at[2].set(params["b2"].astype(jnp.float32))
    pack = pack.at[3].set(params["ln2_g"].astype(jnp.float32))
    pack = pack.at[4].set(params["ln2_b"].astype(jnp.float32))

    grid = (M_pad // row_block,)
    const = lambda i: (0, 0)        # weights / params: same block every step

    # Explicit VMEM budget (double-buffered blocks + f32 temporaries), clamped
    # so it fits v7x's 64 MiB physical VMEM and raises v5e's 16 MiB default.
    xb = jnp.dtype(xf.dtype).itemsize
    wb = jnp.dtype(mxu_dtype).itemsize
    est = (2 * row_block * D * xb * 2            # x + out blocks, double-buffered
           + 2 * 8 * D * 4 + 2 * 8 * H * 4       # packed params + bias1 tiles
           + 2 * (D * H + H * D) * wb            # weights, double-buffered
           + 2 * row_block * H * 4               # hidden-layer f32 temporaries
           + 4 * row_block * D * 4)              # LN / GELU f32 temporaries
    vmem_limit = int(min(max(est * 3 // 2, 32 << 20), 48 << 20))

    x_spec_kwargs = {}
    if x_buffers is not None and x_buffers != 2:
        # Optional deeper pipelining on the streaming input (sweep if the
        # profile still shows exposed input DMA).
        x_spec_kwargs["pipeline_mode"] = pl.Buffered(x_buffers)
    x_spec = pl.BlockSpec((row_block, D), lambda i: (i, 0), **x_spec_kwargs)

    out = pl.pallas_call(
        _make_kernel(approx_gelu),
        out_shape=jax.ShapeDtypeStruct((M_pad, D), x.dtype),
        grid_spec=pltpu.PrefetchScalarGridSpec(
            num_scalar_prefetch=0,
            grid=grid,
            in_specs=[
                x_spec,                               # x rows (streamed)
                pl.BlockSpec((8, D), const),          # packed per-feature params
                pl.BlockSpec((1, H), const),          # b1
                pl.BlockSpec((D, H), const),          # W1^T
                pl.BlockSpec((H, D), const),          # W2^T
            ],
            out_specs=pl.BlockSpec((row_block, D), lambda i: (i, 0)),
        ),
        compiler_params=pltpu.CompilerParams(
            dimension_semantics=("parallel",),        # row blocks are independent
            vmem_limit_bytes=vmem_limit),
    )(xf, pack, bias1, w1t, w2t)

    return out[:M].reshape(orig_shape)


def _reference(x, params):
    """Plain-JAX f32 reference matching PyTorch semantics exactly."""
    def ln(v, g, b):
        mu = v.mean(axis=-1, keepdims=True)
        var = ((v - mu) ** 2).mean(axis=-1, keepdims=True)
        return (v - mu) / jnp.sqrt(var + LN_EPS) * g + b

    def gelu(v):
        return 0.5 * v * (1.0 + jax.lax.erf(v * _INV_SQRT2))

    h = ln(x, params["ln1_g"], params["ln1_b"])
    a = gelu(h @ params["w1"].T + params["b1"])
    y = a @ params["w2"].T + params["b2"]
    return gelu(ln(y, params["ln2_g"], params["ln2_b"]))


if __name__ == "__main__":
    B, S, D, H = 2, 8, 128, 256      # batch, seq, dim, hidden_dim

    keys = jax.random.split(jax.random.PRNGKey(0), 9)
    x = jax.random.normal(keys[0], (B, S, D), dtype=jnp.float32)

    lim1 = 1.0 / math.sqrt(D)        # PyTorch Linear default init bound
    lim2 = 1.0 / math.sqrt(H)
    params = {
        "ln1_g": 1.0 + 0.1 * jax.random.normal(keys[1], (D,), jnp.float32),
        "ln1_b": 0.1 * jax.random.normal(keys[2], (D,), jnp.float32),
        "w1": jax.random.uniform(keys[3], (H, D), jnp.float32, -lim1, lim1),
        "b1": jax.random.uniform(keys[4], (H,), jnp.float32, -lim1, lim1),
        "w2": jax.random.uniform(keys[5], (D, H), jnp.float32, -lim2, lim2),
        "b2": jax.random.uniform(keys[6], (D,), jnp.float32, -lim2, lim2),
        "ln2_g": 1.0 + 0.1 * jax.random.normal(keys[7], (D,), jnp.float32),
        "ln2_b": 0.1 * jax.random.normal(keys[8], (D,), jnp.float32),
    }

    ref = _reference(x, params)

    # 1) f32 MXU path, single block: exact-semantics check against reference.
    out_f32 = jax.block_until_ready(feedforward(x, params, mxu_dtype=jnp.float32))
    assert out_f32.shape == x.shape
    assert np.allclose(np.asarray(out_f32), np.asarray(ref), atol=2e-4, rtol=2e-4)

    # 2) f32 MXU path with a small explicit row_block: exercises the multi-step
    #    pipelined grid (same code path large M takes with the capped default).
    out_multi = jax.block_until_ready(
        feedforward(x, params, mxu_dtype=jnp.float32, row_block=8))
    assert np.allclose(np.asarray(out_multi), np.asarray(ref), atol=2e-4, rtol=2e-4)

    # 3) Default bf16-operand / f32-accumulate MXU path.
    out_bf16w = jax.block_until_ready(feedforward(x, params))
    assert out_bf16w.shape == x.shape
    assert np.allclose(np.asarray(out_bf16w), np.asarray(ref), atol=5e-2, rtol=5e-2)

    # 4) bf16 activation path (bf16 x in / bf16 out, f32 LN stats in-kernel).
    out_bf16a = jax.block_until_ready(feedforward(x.astype(jnp.bfloat16), params))
    assert out_bf16a.dtype == jnp.bfloat16 and out_bf16a.shape == x.shape
    assert np.allclose(np.asarray(out_bf16a, dtype=np.float32), np.asarray(ref),
                       atol=1e-1, rtol=1e-1)

    print("KERNEL_OK")
</pallas_src>

<mosaic_0001>
module attributes {stable_mosaic.version = 11 : i64} {
  func.func @feedforward_kernel(%arg0: i32, %arg1: memref<16x128xf32, #tpu.memory_space<vmem>>, %arg2: memref<8x128xf32, #tpu.memory_space<vmem>>, %arg3: memref<1x256xf32, #tpu.memory_space<vmem>>, %arg4: memref<128x256xf32, #tpu.memory_space<vmem>>, %arg5: memref<256x128xf32, #tpu.memory_space<vmem>>, %arg6: memref<16x128xf32, #tpu.memory_space<vmem>>) attributes {dimension_semantics = [#tpu.dimension_semantics<parallel>], iteration_bounds = array<i64: 1>, scalar_prefetch = 0 : i64, scratch_operands = 0 : i64, tpu.core_type = #tpu.core_type<tc>, window_params = [{transform_indices = @transform_0, window_bounds = array<i64: 16, 128>}, {pipeline_mode = #tpu.pipeline_mode<synchronous>, transform_indices = @transform_1, window_bounds = array<i64: 8, 128>}, {pipeline_mode = #tpu.pipeline_mode<synchronous>, transform_indices = @transform_2, window_bounds = array<i64: 1, 256>}, {pipeline_mode = #tpu.pipeline_mode<synchronous>, transform_indices = @transform_3, window_bounds = array<i64: 128, 256>}, {pipeline_mode = #tpu.pipeline_mode<synchronous>, transform_indices = @transform_4, window_bounds = array<i64: 256, 128>}, {transform_indices = @transform_5, window_bounds = array<i64: 16, 128>}]} {
    %c0 = arith.constant 0 : index
    %c0_0 = arith.constant 0 : index
    %0 = vector.load %arg1[%c0, %c0_0] : memref<16x128xf32, #tpu.memory_space<vmem>>, vector<16x128xf32>
    %c0_1 = arith.constant 0 : index
    %c0_2 = arith.constant 0 : index
    %1 = vector.load %arg2[%c0_1, %c0_2] : memref<8x128xf32, #tpu.memory_space<vmem>>, vector<8x128xf32>
    %2 = vector.extract_strided_slice %1 {offsets = [0, 0], sizes = [1, 128], strides = [1, 1]} : vector<8x128xf32> to vector<1x128xf32>
    %3 = vector.extract_strided_slice %1 {offsets = [1, 0], sizes = [1, 128], strides = [1, 1]} : vector<8x128xf32> to vector<1x128xf32>
    %4 = vector.extract_strided_slice %1 {offsets = [2, 0], sizes = [1, 128], strides = [1, 1]} : vector<8x128xf32> to vector<1x128xf32>
    %5 = vector.extract_strided_slice %1 {offsets = [3, 0], sizes = [1, 128], strides = [1, 1]} : vector<8x128xf32> to vector<1x128xf32>
    %6 = vector.extract_strided_slice %1 {offsets = [4, 0], sizes = [1, 128], strides = [1, 1]} : vector<8x128xf32> to vector<1x128xf32>
    %cst = arith.constant dense<0.000000e+00> : vector<16xf32>
    %7 = vector.multi_reduction <add>, %0, %cst [1] : vector<16x128xf32> to vector<16xf32>
    %8 = vector.shape_cast %7 : vector<16xf32> to vector<16x1xf32>
    %cst_3 = arith.constant 1.280000e+02 : f32
    %9 = vector.broadcast %cst_3 : f32 to vector<16x1xf32>
    %10 = arith.divf %8, %9 : vector<16x1xf32>
    %11 = vector.broadcast %10 : vector<16x1xf32> to vector<16x128xf32>
    %12 = arith.subf %0, %11 : vector<16x128xf32>
    %13 = arith.mulf %12, %12 : vector<16x128xf32>
    %cst_4 = arith.constant dense<0.000000e+00> : vector<16xf32>
    %14 = vector.multi_reduction <add>, %13, %cst_4 [1] : vector<16x128xf32> to vector<16xf32>
    %15 = vector.shape_cast %14 : vector<16xf32> to vector<16x1xf32>
    %cst_5 = arith.constant 1.280000e+02 : f32
    %16 = vector.broadcast %cst_5 : f32 to vector<16x1xf32>
    %17 = arith.divf %15, %16 : vector<16x1xf32>
    %cst_6 = arith.constant 9.99999974E-6 : f32
    %18 = vector.broadcast %cst_6 : f32 to vector<16x1xf32>
    %19 = arith.addf %17, %18 : vector<16x1xf32>
    %20 = math.rsqrt %19 : vector<16x1xf32>
    %21 = vector.broadcast %20 : vector<16x1xf32> to vector<16x128xf32>
    %22 = arith.mulf %12, %21 : vector<16x128xf32>
    %23 = vector.broadcast %2 : vector<1x128xf32> to vector<16x128xf32>
    %24 = arith.mulf %22, %23 : vector<16x128xf32>
    %25 = vector.broadcast %3 : vector<1x128xf32> to vector<16x128xf32>
    %26 = arith.addf %24, %25 : vector<16x128xf32>
    %c0_7 = arith.constant 0 : index
    %c0_8 = arith.constant 0 : index
    %27 = vector.load %arg4[%c0_7, %c0_8] : memref<128x256xf32, #tpu.memory_space<vmem>>, vector<128x256xf32>
    %cst_9 = arith.constant dense<0.000000e+00> : vector<16x256xf32>
    %28 = tpu.matmul %26, %27, %cst_9 {dimension_numbers = #tpu.dot_dimension_numbers<[1], [0], [0], [1], [0, 0, 1, 1], [], []>} : vector<16x128xf32>, vector<128x256xf32>, vector<16x256xf32> -> vector<16x256xf32>
    %c0_10 = arith.constant 0 : index
    %c0_11 = arith.constant 0 : index
    %29 = vector.load %arg3[%c0_10, %c0_11] : memref<1x256xf32, #tpu.memory_space<vmem>>, vector<1x256xf32>
    %30 = vector.broadcast %29 : vector<1x256xf32> to vector<16x256xf32>
    %31 = arith.addf %28, %30 : vector<16x256xf32>
    %cst_12 = arith.constant 5.000000e-01 : f32
    %32 = vector.broadcast %cst_12 : f32 to vector<16x256xf32>
    %33 = arith.mulf %32, %31 : vector<16x256xf32>
    %cst_13 = arith.constant 0.707106769 : f32
    %34 = vector.broadcast %cst_13 : f32 to vector<16x256xf32>
    %35 = arith.mulf %31, %34 : vector<16x256xf32>
    %36 = math.erf %35 : vector<16x256xf32>
    %cst_14 = arith.constant 1.000000e+00 : f32
    %37 = vector.broadcast %cst_14 : f32 to vector<16x256xf32>
    %38 = arith.addf %37, %36 : vector<16x256xf32>
    %39 = arith.mulf %33, %38 : vector<16x256xf32>
    %c0_15 = arith.constant 0 : index
    %c0_16 = arith.constant 0 : index
    %40 = vector.load %arg5[%c0_15, %c0_16] : memref<256x128xf32, #tpu.memory_space<vmem>>, vector<256x128xf32>
    %cst_17 = arith.constant dense<0.000000e+00> : vector<16x128xf32>
    %41 = tpu.matmul %39, %40, %cst_17 {dimension_numbers = #tpu.dot_dimension_numbers<[1], [0], [0], [1], [0, 0, 1, 1], [], []>} : vector<16x256xf32>, vector<256x128xf32>, vector<16x128xf32> -> vector<16x128xf32>
    %42 = vector.broadcast %4 : vector<1x128xf32> to vector<16x128xf32>
    %43 = arith.addf %41, %42 : vector<16x128xf32>
    %cst_18 = arith.constant dense<0.000000e+00> : vector<16xf32>
    %44 = vector.multi_reduction <add>, %43, %cst_18 [1] : vector<16x128xf32> to vector<16xf32>
    %45 = vector.shape_cast %44 : vector<16xf32> to vector<16x1xf32>
    %cst_19 = arith.constant 1.280000e+02 : f32
    %46 = vector.broadcast %cst_19 : f32 to vector<16x1xf32>
    %47 = arith.divf %45, %46 : vector<16x1xf32>
    %48 = vector.broadcast %47 : vector<16x1xf32> to vector<16x128xf32>
    %49 = arith.subf %43, %48 : vector<16x128xf32>
    %50 = arith.mulf %49, %49 : vector<16x128xf32>
    %cst_20 = arith.constant dense<0.000000e+00> : vector<16xf32>
    %51 = vector.multi_reduction <add>, %50, %cst_20 [1] : vector<16x128xf32> to vector<16xf32>
    %52 = vector.shape_cast %51 : vector<16xf32> to vector<16x1xf32>
    %cst_21 = arith.constant 1.280000e+02 : f32
    %53 = vector.broadcast %cst_21 : f32 to vector<16x1xf32>
    %54 = arith.divf %52, %53 : vector<16x1xf32>
    %cst_22 = arith.constant 9.99999974E-6 : f32
    %55 = vector.broadcast %cst_22 : f32 to vector<16x1xf32>
    %56 = arith.addf %54, %55 : vector<16x1xf32>
    %57 = math.rsqrt %56 : vector<16x1xf32>
    %58 = vector.broadcast %57 : vector<16x1xf32> to vector<16x128xf32>
    %59 = arith.mulf %49, %58 : vector<16x128xf32>
    %60 = vector.broadcast %5 : vector<1x128xf32> to vector<16x128xf32>
    %61 = arith.mulf %59, %60 : vector<16x128xf32>
    %62 = vector.broadcast %6 : vector<1x128xf32> to vector<16x128xf32>
    %63 = arith.addf %61, %62 : vector<16x128xf32>
    %cst_23 = arith.constant 5.000000e-01 : f32
    %64 = vector.broadcast %cst_23 : f32 to vector<16x128xf32>
    %65 = arith.mulf %64, %63 : vector<16x128xf32>
    %cst_24 = arith.constant 0.707106769 : f32
    %66 = vector.broadcast %cst_24 : f32 to vector<16x128xf32>
    %67 = arith.mulf %63, %66 : vector<16x128xf32>
    %68 = math.erf %67 : vector<16x128xf32>
    %cst_25 = arith.constant 1.000000e+00 : f32
    %69 = vector.broadcast %cst_25 : f32 to vector<16x128xf32>
    %70 = arith.addf %69, %68 : vector<16x128xf32>
    %71 = arith.mulf %65, %70 : vector<16x128xf32>
    %c0_26 = arith.constant 0 : index
    %c0_27 = arith.constant 0 : index
    %72 = vector.load %arg6[%c0_26, %c0_27] : memref<16x128xf32, #tpu.memory_space<vmem>>, vector<16x128xf32>
    tpu.vector_store %arg6[%c0_26, %c0_27], %71 {strides = array<i32>} : memref<16x128xf32, #tpu.memory_space<vmem>>, vector<16x128xf32>,
    return
  }
  func.func @transform_0(%arg0: i32) -> (i32, i32) {
    %c0_i32 = arith.constant 0 : i32
    %c0_i32_0 = arith.constant 0 : i32
    return %arg0, %c0_i32 : i32, i32
  }
  func.func @transform_1(%arg0: i32) -> (i32, i32) {
    %c0_i32 = arith.constant 0 : i32
    %c0_i32_0 = arith.constant 0 : i32
    %c0_i32_1 = arith.constant 0 : i32
    return %c0_i32, %c0_i32_0 : i32, i32
  }
  func.func @transform_2(%arg0: i32) -> (i32, i32) {
    %c0_i32 = arith.constant 0 : i32
    %c0_i32_0 = arith.constant 0 : i32
    %c0_i32_1 = arith.constant 0 : i32
    return %c0_i32, %c0_i32_0 : i32, i32
  }
  func.func @transform_3(%arg0: i32) -> (i32, i32) {
    %c0_i32 = arith.constant 0 : i32
    %c0_i32_0 = arith.constant 0 : i32
    %c0_i32_1 = arith.constant 0 : i32
    return %c0_i32, %c0_i32_0 : i32, i32
  }
  func.func @transform_4(%arg0: i32) -> (i32, i32) {
    %c0_i32 = arith.constant 0 : i32
    %c0_i32_0 = arith.constant 0 : i32
    %c0_i32_1 = arith.constant 0 : i32
    return %c0_i32, %c0_i32_0 : i32, i32
  }
  func.func @transform_5(%arg0: i32) -> (i32, i32) {
    %c0_i32 = arith.constant 0 : i32
    %c0_i32_0 = arith.constant 0 : i32
    return %arg0, %c0_i32 : i32, i32
  }
}

</mosaic_0001>

<llo_original>
// kernel: tpu_custom_call.1
$region0: #{tpu_custom_call.1}
  #allocation0 [shape = 'u32[]', space=smem, size = 0x4, offset = 0x4, fixed_abs, tag = 'smem constant byte address 0x4 - core index']
  #allocation1 [shape = 'u32[144,128]{1,0:T(1,128)}', space=vmem, size = 0x12000, scoped, tag = 'internal scratch']
  %s0 = inlined_call_operand.hbm [shape: f32[16,128], index: 0, kind: input, shape index: {}]
  %s1 = inlined_call_operand.hbm [shape: f32[8,128], index: 1, kind: input, shape index: {}]
  %s2 = inlined_call_operand.vmem [shape: f32[1,256], index: 2, kind: input, shape index: {}]
  %s3 = inlined_call_operand.hbm [shape: f32[128,256], index: 3, kind: input, shape index: {}]
  %s4 = inlined_call_operand.hbm [shape: f32[256,128], index: 4, kind: input, shape index: {}]
  %s5 = inlined_call_operand.hbm [shape: f32[16,128], index: 5, kind: output, shape index: {}]
  %s6 = sld [smem:[#allocation0]]
  $region46: #{tpu_custom_call.1} parent=0
    _
  %s8 = ssub.s32 1, %s6
  %s9 = scalar_select 0, %s8, %s6
  $region1: #{tpu_custom_call.1} parent=0
    #allocation2 [shape = 'u8[8192]{0}', space=vmem, size = 0x2000, scoped, tag = 'input window, operand 0, single buffered']
    #allocation3 [shape = 's32[1]{0}', space=sflag, size = 0x4, scoped, tag = 'scoped memory for tpu_custom_call.1']
    #allocation4 [shape = 's32[1]{0}', space=sflag, size = 0x4, scoped, tag = 'scoped memory for tpu_custom_call.1']
    #allocation5 [shape = 'u8[4096]{0}', space=vmem, size = 0x1000, scoped, tag = 'input window, operand 1, single buffered']
    #allocation6 [shape = 's32[1]{0}', space=sflag, size = 0x4, scoped, tag = 'scoped memory for tpu_custom_call.1']
    #allocation7 [shape = 'u8[131072]{0}', space=vmem, size = 0x20000, scoped, tag = 'input window, operand 3, single buffered']
    #allocation8 [shape = 'u8[131072]{0}', space=vmem, size = 0x20000, scoped, tag = 'input window, operand 4, single buffered']
    #allocation9 [shape = 's32[1]{0}', space=sflag, size = 0x4, scoped, tag = 'scoped memory for tpu_custom_call.1']
    #allocation10 [shape = 'u8[8192]{0}', space=vmem, size = 0x2000, scoped, tag = 'output window, operand 0, single buffered']
    %10 = vsyncpa [#allocation3], 0
    %11 = vsyncpa [#allocation6], 0
    %12 = vsyncpa [#allocation9], 0
    %13 = vsyncpa [#allocation4], 0
    // Predicated region
    $region2: #{tpu_custom_call.1} parent=1 // pred_check
      _
    $region3: #{tpu_custom_call.1} parent=1 // pred_check_branch
      %15 = sbr.rel (0) target = $region5
    $region4: #{tpu_custom_call.1} parent=1 // pred_region
      %s17 = ssub.s32 256, 256
      %18 = vsyncadd [#allocation3], %s17
      %s19 = sshll.u32 [#allocation2], 4
      %s20 = int_to_ptr.vmem [resolvable:$true] %s19
      %25 = dma.hbm_to_vmem [thread:$0]  %s0, 256, %s20, [#allocation3], 128, 128, 8
    $region5: #{tpu_custom_call.1} parent=1 // pred_fallthru
      _
    // Predicated region
    $region6: #{tpu_custom_call.1} parent=1 // pred_check
      _
    $region7: #{tpu_custom_call.1} parent=1 // pred_check_branch
      %27 = sbr.rel (0) target = $region9
    $region8: #{tpu_custom_call.1} parent=1 // pred_region
      %s29 = ssub.s32 128, 128
      %30 = vsyncadd [#allocation6], %s29
      %s32 = sshll.u32 [#allocation5], 4
      %s33 = int_to_ptr.vmem [resolvable:$true] %s32
      %35 = dma.hbm_to_vmem [thread:$0]  %s1, 128, %s33, [#allocation6]
    $region9: #{tpu_custom_call.1} parent=1 // pred_fallthru
      _
    // Predicated region
    $region10: #{tpu_custom_call.1} parent=1 // pred_check
      _
    $region11: #{tpu_custom_call.1} parent=1 // pred_check_branch
      %37 = sbr.rel (0) target = $region13
    $region12: #{tpu_custom_call.1} parent=1 // pred_region
      _
    $region13: #{tpu_custom_call.1} parent=1 // pred_fallthru
      _
    // Predicated region
    $region14: #{tpu_custom_call.1} parent=1 // pred_check
      _
    $region15: #{tpu_custom_call.1} parent=1 // pred_check_branch
      %39 = sbr.rel (0) target = $region17
    $region16: #{tpu_custom_call.1} parent=1 // pred_region
      %s41 = ssub.s32 4096, 4096
      %42 = vsyncadd [#allocation6], %s41
      %s43 = sshll.u32 [#allocation7], 4
      %s44 = int_to_ptr.vmem [resolvable:$true] %s43
      %49 = dma.hbm_to_vmem [thread:$0]  %s3, 4096, %s44, [#allocation6], 256, 256, 16
    $region17: #{tpu_custom_call.1} parent=1 // pred_fallthru
      _
    // Predicated region
    $region18: #{tpu_custom_call.1} parent=1 // pred_check
      _
    $region19: #{tpu_custom_call.1} parent=1 // pred_check_branch
      %51 = sbr.rel (0) target = $region21
    $region20: #{tpu_custom_call.1} parent=1 // pred_region
      %s53 = ssub.s32 4096, 4096
      %54 = vsyncadd [#allocation9], %s53
      %s55 = sshll.u32 [#allocation8], 4
      %s56 = int_to_ptr.vmem [resolvable:$true] %s55
      %61 = dma.hbm_to_vmem [thread:$0]  %s4, 4096, %s56, [#allocation9], 128, 128, 8
    $region21: #{tpu_custom_call.1} parent=1 // pred_fallthru
      _
    // Predicated region
    $region22: #{tpu_custom_call.1} parent=1 // pred_check
      _
    $region23: #{tpu_custom_call.1} parent=1 // pred_check_branch
      %63 = sbr.rel (0) target = $region25
    $region24: #{tpu_custom_call.1} parent=1 // pred_region
      %64 = dma.done [#allocation3], 256
    $region25: #{tpu_custom_call.1} parent=1 // pred_fallthru
      _
    // Predicated region
    $region26: #{tpu_custom_call.1} parent=1 // pred_check
      _
    $region27: #{tpu_custom_call.1} parent=1 // pred_check_branch
      %66 = sbr.rel (0) target = $region29
    $region28: #{tpu_custom_call.1} parent=1 // pred_region
      %67 = dma.done [#allocation6], 128
    $region29: #{tpu_custom_call.1} parent=1 // pred_fallthru
      _
    // Predicated region
    $region30: #{tpu_custom_call.1} parent=1 // pred_check
      _
    $region31: #{tpu_custom_call.1} parent=1 // pred_check_branch
      %69 = sbr.rel (0) target = $region33
    $region32: #{tpu_custom_call.1} parent=1 // pred_region
      %70 = dma.done [#allocation6], 4096
    $region33: #{tpu_custom_call.1} parent=1 // pred_fallthru
      _
    // Predicated region
    $region34: #{tpu_custom_call.1} parent=1 // pred_check
      _
    $region35: #{tpu_custom_call.1} parent=1 // pred_check_branch
      %72 = sbr.rel (0) target = $region37
    $region36: #{tpu_custom_call.1} parent=1 // pred_region
      %73 = dma.done [#allocation9], 4096
    $region37: #{tpu_custom_call.1} parent=1 // pred_fallthru
      _
    %v74 = vld [vmem:[#allocation2] sm:$0xff]
    %v75 = vld [vmem:[#allocation2 + $0x8] sm:$0xff]
    %v76 = vld [vmem:[#allocation5] sm:$0xff]
    %77 = vadd.xlane.f32.xlu0 %v74
    %v78 = vpop.xlane.xlu0 %77
    %79 = vadd.xlane.f32.xlu0 %v75
    %v80 = vpop.xlane.xlu0 %79
    %v81 = vrcp.pop 128.0
    %v82 = vmul.f32 %v78, %v81
    %v83 = vmul.f32 %v80, %v81
    %v84 = vsub.f32 %v74, %v82
    %v85 = vsub.f32 %v75, %v83
    %v86 = vmul.f32 %v84, %v84
    %v87 = vmul.f32 %v85, %v85
    %88 = vadd.xlane.f32.xlu0 %v86
    %v89 = vpop.xlane.xlu0 %88
    %90 = vadd.xlane.f32.xlu0 %v87
    %v91 = vpop.xlane.xlu0 %90
    %v92 = vmul.f32 %v89, %v81
    %v93 = vmul.f32 %v91, %v81
    %v94 = vadd.f32 %v92, 1e-05
    %v95 = vadd.f32 %v93, 1e-05
    %v96 = vrsqrt.pop %v94
    %v97 = vrsqrt.pop %v95
    %v98 = vmul.f32 %v84, %v96
    %v99 = vmul.f32 %v85, %v97
    %v100 = vlaneseq
    %v101 = vshrl.u32 %v100, 7
    %v102 = vsub.s32 0, %v101
    %v103 = vrot.slane %v76, %v102
    %v104 = vmul.f32 %v98, %v103
    %v105 = vmul.f32 %v99, %v103
    %v106 = vlaneseq
    %v107 = vshrl.u32 %v106, 7
    %v108 = vsub.s32 1, %v107
    %v109 = vrot.slane %v76, %v108
    %v110 = vadd.f32 %v104, %v109
    %v111 = vadd.f32 %v105, %v109
    %v112 = vld [vmem:[#allocation7] sm:$0xff]
    %v113 = vld [vmem:[#allocation7 + $0x8] sm:$0xff]
    %v114 = vld [vmem:[#allocation7 + $0x10] sm:$0xff]
    %v115 = vld [vmem:[#allocation7 + $0x18] sm:$0xff]
    %v116 = vld [vmem:[#allocation7 + $0x20] sm:$0xff]
    %v117 = vld [vmem:[#allocation7 + $0x28] sm:$0xff]
    %v118 = vld [vmem:[#allocation7 + $0x30] sm:$0xff]
    %v119 = vld [vmem:[#allocation7 + $0x38] sm:$0xff]
    %v120 = vld [vmem:[#allocation7 + $0x40] sm:$0xff]
    %v121 = vld [vmem:[#allocation7 + $0x48] sm:$0xff]
    %v122 = vld [vmem:[#allocation7 + $0x50] sm:$0xff]
    %v123 = vld [vmem:[#allocation7 + $0x58] sm:$0xff]
    %v124 = vld [vmem:[#allocation7 + $0x60] sm:$0xff]
    %v125 = vld [vmem:[#allocation7 + $0x68] sm:$0xff]
    %v126 = vld [vmem:[#allocation7 + $0x70] sm:$0xff]
    %v127 = vld [vmem:[#allocation7 + $0x78] sm:$0xff]
    %v128 = vld [vmem:[#allocation7 + $0x80] sm:$0xff]
    %v129 = vld [vmem:[#allocation7 + $0x88] sm:$0xff]
    %v130 = vld [vmem:[#allocation7 + $0x90] sm:$0xff]
    %v131 = vld [vmem:[#allocation7 + $0x98] sm:$0xff]
    %v132 = vld [vmem:[#allocation7 + $0xa0] sm:$0xff]
    %v133 = vld [vmem:[#allocation7 + $0xa8] sm:$0xff]
    %v134 = vld [vmem:[#allocation7 + $0xb0] sm:$0xff]
    %v135 = vld [vmem:[#allocation7 + $0xb8] sm:$0xff]
    %v136 = vld [vmem:[#allocation7 + $0xc0] sm:$0xff]
    %v137 = vld [vmem:[#allocation7 + $0xc8] sm:$0xff]
    %v138 = vld [vmem:[#allocation7 + $0xd0] sm:$0xff]
    %v139 = vld [vmem:[#allocation7 + $0xd8] sm:$0xff]
    %v140 = vld [vmem:[#allocation7 + $0xe0] sm:$0xff]
    %v141 = vld [vmem:[#allocation7 + $0xe8] sm:$0xff]
    %v142 = vld [vmem:[#allocation7 + $0xf0] sm:$0xff]
    %v143 = vld [vmem:[#allocation7 + $0xf8] sm:$0xff]
    %v144 = vld [vmem:[%s2] sm:$0x3]
    %v146 = vlaneseq
    %v147 = vshrl.u32 %v146, 7
    %v148 = vsub.s32 0, %v147
    %v149 = vrot.slane %v144, %v148
    %v150 = vlaneseq
    %v151 = vshrl.u32 %v150, 7
    %v152 = vsub.s32 1, %v151
    %v153 = vrot.slane %v144, %v152
    %156 = vmatprep.subr.mxu0 %v143
    %157 = vmatpush1.msra.mxu0 %v142
    %158 = vmatprep.subr.mxu0 %v141
    %159 = vmatpush1.msra.mxu0 %v140
    %160 = vmatprep.subr.mxu0 %v139
    %161 = vmatpush1.msra.mxu0 %v138
    %162 = vmatprep.subr.mxu0 %v137
    %163 = vmatpush1.msra.mxu0 %v136
    %164 = vmatprep.subr.mxu0 %v135
    %165 = vmatpush1.msra.mxu0 %v134
    %166 = vmatprep.subr.mxu0 %v133
    %167 = vmatpush1.msra.mxu0 %v132
    %168 = vmatprep.subr.mxu0 %v131
    %169 = vmatpush1.msra.mxu0 %v130
    %170 = vmatprep.subr.mxu0 %v129
    %171 = vmatpush1.msra.mxu0 %v128
    %172 = vmatprep.subr.mxu0 %v127
    %173 = vmatpush1.msra.mxu0 %v126
    %174 = vmatprep.subr.mxu0 %v125
    %175 = vmatpush1.msra.mxu0 %v124
    %176 = vmatprep.subr.mxu0 %v123
    %177 = vmatpush1.msra.mxu0 %v122
    %178 = vmatprep.subr.mxu0 %v121
    %179 = vmatpush1.msra.mxu0 %v120
    %180 = vmatprep.subr.mxu0 %v119
    %181 = vmatpush1.msra.mxu0 %v118
    %182 = vmatprep.subr.mxu0 %v117
    %183 = vmatpush1.msra.mxu0 %v116
    %184 = vmatprep.subr.mxu0 %v115
    %185 = vmatpush1.msra.mxu0 %v114
    %186 = vmatprep.subr.mxu0 %v113
    %187 = vmatpush1.msra.mxu0 %v112
    %188 = vmatprep.subr.mxu0 0.0
    %189 = vmatpush2.msra.mxu0 0.0
    %190 = vmatprep.subr.mxu0 0.0
    %191 = vmatpush2.msra.mxu0 0.0
    %192 = vmatprep.subr.mxu0 0.0
    %193 = vmatpush2.msra.mxu0 0.0
    %194 = vmatprep.subr.mxu0 0.0
    %195 = vmatpush2.msra.mxu0 0.0
    %196 = vmatprep.subr.mxu0 0.0
    %197 = vmatpush2.msra.mxu0 0.0
    %198 = vmatprep.subr.mxu0 0.0
    %199 = vmatpush2.msra.mxu0 0.0
    %200 = vmatprep.subr.mxu0 0.0
    %201 = vmatpush2.msra.mxu0 0.0
    %202 = vmatprep.subr.mxu0 0.0
    %203 = vmatpush2.msra.mxu0 0.0
    %204 = vmatprep.subr.mxu0 0.0
    %205 = vmatpush2.msra.mxu0 0.0
    %206 = vmatprep.subr.mxu0 0.0
    %207 = vmatpush2.msra.mxu0 0.0
    %208 = vmatprep.subr.mxu0 0.0
    %209 = vmatpush2.msra.mxu0 0.0
    %210 = vmatprep.subr.mxu0 0.0
    %211 = vmatpush2.msra.mxu0 0.0
    %212 = vmatprep.subr.mxu0 0.0
    %213 = vmatpush2.msra.mxu0 0.0
    %214 = vmatprep.subr.mxu0 0.0
    %215 = vmatpush2.msra.mxu0 0.0
    %216 = vmatprep.subr.mxu0 0.0
    %217 = vmatpush2.msra.mxu0 0.0
    %218 = vmatprep.subr.mxu0 0.0
    %219 = vmatpush2.msra.mxu0 0.0
    %220 = vmatprep.mubr.f32.mxu0 0.0
    %221 = vmatmul.mubr.f32.gmra.mxu0 %v110
    %v222 = vpop.f32.mrf.mxu0
    %v223 = vadd.f32 %v149, %v222
    %v224 = vpop.f32.mrf.mxu0
    %v225 = vadd.f32 %v153, %v224
    %226 = vmatprep.mubr.f32.mxu0 0.0
    %227 = vmatmul.mubr.f32.gmra.mxu0 %v111
    %v228 = vpop.f32.mrf.mxu0
    %v229 = vadd.f32 %v149, %v228
    %v230 = vpop.f32.mrf.mxu0
    %v231 = vadd.f32 %v153, %v230
    %232 = vdwg.mxu0
    %v233 = vmul.f32 %v223, 0.5
    %v234 = vmul.f32 %v225, 0.5
    %v235 = vmul.f32 %v229, 0.5
    %v236 = vmul.f32 %v231, 0.5
    %v237 = vmul.f32 %v223, 0.70710677
    %v238 = vmul.f32 %v225, 0.70710677
    %v239 = vmul.f32 %v229, 0.70710677
    %v240 = vmul.f32 %v231, 0.70710677
    %v241 = verf.f32.pop %v237
    %v242 = verf.f32.pop %v238
    %v243 = verf.f32.pop %v239
    %v244 = verf.f32.pop %v240
    %v245 = vadd.f32 %v241, 1.0
    %v246 = vadd.f32 %v242, 1.0
    %v247 = vadd.f32 %v243, 1.0
    %v248 = vadd.f32 %v244, 1.0
    %v249 = vmul.f32 %v233, %v245
    %v250 = vmul.f32 %v234, %v246
    %v251 = vmul.f32 %v235, %v247
    %v252 = vmul.f32 %v236, %v248
    %v253 = vld [vmem:[#allocation8] sm:$0xff]
    %v254 = vld [vmem:[#allocation8 + $0x8] sm:$0xff]
    %v255 = vld [vmem:[#allocation8 + $0x10] sm:$0xff]
    %v256 = vld [vmem:[#allocation8 + $0x18] sm:$0xff]
    %v257 = vld [vmem:[#allocation8 + $0x20] sm:$0xff]
    %v258 = vld [vmem:[#allocation8 + $0x28] sm:$0xff]
    %v259 = vld [vmem:[#allocation8 + $0x30] sm:$0xff]
    %v260 = vld [vmem:[#allocation8 + $0x38] sm:$0xff]
    %v261 = vld [vmem:[#allocation8 + $0x40] sm:$0xff]
    %v262 = vld [vmem:[#allocation8 + $0x48] sm:$0xff]
    %v263 = vld [vmem:[#allocation8 + $0x50] sm:$0xff]
    %v264 = vld [vmem:[#allocation8 + $0x58] sm:$0xff]
    %v265 = vld [vmem:[#allocation8 + $0x60] sm:$0xff]
    %v266 = vld [vmem:[#allocation8 + $0x68] sm:$0xff]
    %v267 = vld [vmem:[#allocation8 + $0x70] sm:$0xff]
    %v268 = vld [vmem:[#allocation8 + $0x78] sm:$0xff]
    %v269 = vld [vmem:[#allocation8 + $0x80] sm:$0xff]
    %v270 = vld [vmem:[#allocation8 + $0x88] sm:$0xff]
    %v271 = vld [vmem:[#allocation8 + $0x90] sm:$0xff]
    %v272 = vld [vmem:[#allocation8 + $0x98] sm:$0xff]
    %v273 = vld [vmem:[#allocation8 + $0xa0] sm:$0xff]
    %v274 = vld [vmem:[#allocation8 + $0xa8] sm:$0xff]
    %v275 = vld [vmem:[#allocation8 + $0xb0] sm:$0xff]
    %v276 = vld [vmem:[#allocation8 + $0xb8] sm:$0xff]
    %v277 = vld [vmem:[#allocation8 + $0xc0] sm:$0xff]
    %v278 = vld [vmem:[#allocation8 + $0xc8] sm:$0xff]
    %v279 = vld [vmem:[#allocation8 + $0xd0] sm:$0xff]
    %v280 = vld [vmem:[#allocation8 + $0xd8] sm:$0xff]
    %v281 = vld [vmem:[#allocation8 + $0xe0] sm:$0xff]
    %v282 = vld [vmem:[#allocation8 + $0xe8] sm:$0xff]
    %v283 = vld [vmem:[#allocation8 + $0xf0] sm:$0xff]
    %v284 = vld [vmem:[#allocation8 + $0xf8] sm:$0xff]
    %v285 = vlaneseq
    %v286 = vshrl.u32 %v285, 7
    %v287 = vsub.s32 2, %v286
    %v288 = vrot.slane %v76, %v287
    %289 = vmatprep.subr.mxu0 0.0
    %290 = vmatpush1.msra.mxu0 %v268
    %291 = vmatprep.subr.mxu0 0.0
    %292 = vmatpush1.msra.mxu0 %v267
    %293 = vmatprep.subr.mxu0 0.0
    %294 = vmatpush1.msra.mxu0 %v266
    %295 = vmatprep.subr.mxu0 0.0
    %296 = vmatpush1.msra.mxu0 %v265
    %297 = vmatprep.subr.mxu0 0.0
    %298 = vmatpush1.msra.mxu0 %v264
    %299 = vmatprep.subr.mxu0 0.0
    %300 = vmatpush1.msra.mxu0 %v263
    %301 = vmatprep.subr.mxu0 0.0
    %302 = vmatpush1.msra.mxu0 %v262
    %303 = vmatprep.subr.mxu0 0.0
    %304 = vmatpush1.msra.mxu0 %v261
    %305 = vmatprep.subr.mxu0 0.0
    %306 = vmatpush1.msra.mxu0 %v260
    %307 = vmatprep.subr.mxu0 0.0
    %308 = vmatpush1.msra.mxu0 %v259
    %309 = vmatprep.subr.mxu0 0.0
    %310 = vmatpush1.msra.mxu0 %v258
    %311 = vmatprep.subr.mxu0 0.0
    %312 = vmatpush1.msra.mxu0 %v257
    %313 = vmatprep.subr.mxu0 0.0
    %314 = vmatpush1.msra.mxu0 %v256
    %315 = vmatprep.subr.mxu0 0.0
    %316 = vmatpush1.msra.mxu0 %v255
    %317 = vmatprep.subr.mxu0 0.0
    %318 = vmatpush1.msra.mxu0 %v254
    %319 = vmatprep.subr.mxu0 0.0
    %320 = vmatpush1.msra.mxu0 %v253
    %321 = vmatprep.subr.mxu0 0.0
    %322 = vmatpush2.msra.mxu0 %v284
    %323 = vmatprep.subr.mxu0 0.0
    %324 = vmatpush2.msra.mxu0 %v283
    %325 = vmatprep.subr.mxu0 0.0
    %326 = vmatpush2.msra.mxu0 %v282
    %327 = vmatprep.subr.mxu0 0.0
    %328 = vmatpush2.msra.mxu0 %v281
    %329 = vmatprep.subr.mxu0 0.0
    %330 = vmatpush2.msra.mxu0 %v280
    %331 = vmatprep.subr.mxu0 0.0
    %332 = vmatpush2.msra.mxu0 %v279
    %333 = vmatprep.subr.mxu0 0.0
    %334 = vmatpush2.msra.mxu0 %v278
    %335 = vmatprep.subr.mxu0 0.0
    %336 = vmatpush2.msra.mxu0 %v277
    %337 = vmatprep.subr.mxu0 0.0
    %338 = vmatpush2.msra.mxu0 %v276
    %339 = vmatprep.subr.mxu0 0.0
    %340 = vmatpush2.msra.mxu0 %v275
    %341 = vmatprep.subr.mxu0 0.0
    %342 = vmatpush2.msra.mxu0 %v274
    %343 = vmatprep.subr.mxu0 0.0
    %344 = vmatpush2.msra.mxu0 %v273
    %345 = vmatprep.subr.mxu0 0.0
    %346 = vmatpush2.msra.mxu0 %v272
    %347 = vmatprep.subr.mxu0 0.0
    %348 = vmatpush2.msra.mxu0 %v271
    %349 = vmatprep.subr.mxu0 0.0
    %350 = vmatpush2.msra.mxu0 %v270
    %351 = vmatprep.subr.mxu0 0.0
    %352 = vmatpush2.msra.mxu0 %v269
    %353 = vmatprep.mubr.f32.mxu0 %v250
    %354 = vmatmul.mubr.f32.gmra.mxu0 %v249
    %v355 = vpop.f32.mrf.mxu0
    %v356 = vadd.f32 %v288, %v355
    %v357 = vpop.f32.mrf.mxu0
    %358 = vmatprep.mubr.f32.mxu0 %v252
    %359 = vmatmul.mubr.f32.gmra.mxu0 %v251
    %v360 = vpop.f32.mrf.mxu0
    %v361 = vadd.f32 %v288, %v360
    %v362 = vpop.f32.mrf.mxu0
    %363 = vdwg.mxu0
    %364 = vadd.xlane.f32.xlu0 %v356
    %v365 = vpop.xlane.xlu0 %364
    %366 = vadd.xlane.f32.xlu0 %v361
    %v367 = vpop.xlane.xlu0 %366
    %v368 = vmul.f32 %v365, %v81
    %v369 = vmul.f32 %v367, %v81
    %v370 = vsub.f32 %v356, %v368
    %v371 = vsub.f32 %v361, %v369
    %v372 = vmul.f32 %v370, %v370
    %v373 = vmul.f32 %v371, %v371
    %374 = vadd.xlane.f32.xlu0 %v372
    %v375 = vpop.xlane.xlu0 %374
    %376 = vadd.xlane.f32.xlu0 %v373
    %v377 = vpop.xlane.xlu0 %376
    %v378 = vmul.f32 %v375, %v81
    %v379 = vmul.f32 %v377, %v81
    %v380 = vadd.f32 %v378, 1e-05
    %v381 = vadd.f32 %v379, 1e-05
    %v382 = vrsqrt.pop %v380
    %v383 = vrsqrt.pop %v381
    %v384 = vmul.f32 %v370, %v382
    %v385 = vmul.f32 %v371, %v383
    %v386 = vlaneseq
    %v387 = vshrl.u32 %v386, 7
    %v388 = vsub.s32 3, %v387
    %v389 = vrot.slane %v76, %v388
    %v390 = vmul.f32 %v384, %v389
    %v391 = vmul.f32 %v385, %v389
    %v392 = vlaneseq
    %v393 = vshrl.u32 %v392, 7
    %v394 = vsub.s32 4, %v393
    %v395 = vrot.slane %v76, %v394
    %v396 = vadd.f32 %v390, %v395
    %v397 = vadd.f32 %v391, %v395
    %v398 = vmul.f32 %v396, 0.5
    %v399 = vmul.f32 %v397, 0.5
    %v400 = vmul.f32 %v396, 0.70710677
    %v401 = vmul.f32 %v397, 0.70710677
    %v402 = verf.f32.pop %v400
    %v403 = verf.f32.pop %v401
    %v404 = vadd.f32 %v402, 1.0
    %v405 = vadd.f32 %v403, 1.0
    %v406 = vmul.f32 %v398, %v404
    %v407 = vmul.f32 %v399, %v405
    %408 = vst [vmem:[#allocation10] sm:$0xff] %v406
    %409 = vst [vmem:[#allocation10 + $0x8] sm:$0xff] %v407
    // Predicated region
    $region38: #{tpu_custom_call.1} parent=1 // pred_check
      _
    $region39: #{tpu_custom_call.1} parent=1 // pred_check_branch
      %411 = sbr.rel (0) target = $region41
    $region40: #{tpu_custom_call.1} parent=1 // pred_region
      %s413 = ssub.s32 256, 256
      %414 = vsyncadd [#allocation4], %s413
      %s415 = sshll.u32 [#allocation10], 4
      %s416 = int_to_ptr.vmem [resolvable:$true] %s415
      %421 = dma.vmem_to_hbm [thread:$0]  %s416, 256, %s5, [#allocation4], 128, 128, 8
    $region41: #{tpu_custom_call.1} parent=1 // pred_fallthru
      _
    // Predicated region
    $region42: #{tpu_custom_call.1} parent=1 // pred_check
      _
    $region43: #{tpu_custom_call.1} parent=1 // pred_check_branch
      %423 = sbr.rel (0) target = $region45
    $region44: #{tpu_custom_call.1} parent=1 // pred_region
      %424 = dma.done [#allocation4], 256
    $region45: #{tpu_custom_call.1} parent=1 // pred_fallthru
      _
    %425 = vsyncpa [#allocation3], 1
    %426 = vsyncpa [#allocation6], 1
    %427 = vsyncpa [#allocation9], 1
    %428 = vsyncpa [#allocation4], 1

</llo_original>
